<compile_context>
chip_gen: v7x
topology: tpu7x:2x2x1
jax: 0.10.0
libtpu: 0.0.40
codegen_flags: <defaults>
</compile_context>

<pallas_src>
import math

import numpy as np
import jax
import jax.numpy as jnp
from jax.experimental import pallas as pl
from jax.experimental.pallas import tpu as pltpu


def _round_up(v: int, m: int) -> int:
    return ((v + m - 1) // m) * m


# ----------------------------------------------------------------------------
# Heuristics (mirror the PyTorch module, eval path)
# ----------------------------------------------------------------------------
def _embedding_heuristic(
    dim_input: int,
    model_size: str = "M",
    embedding_scale_factor: float = 2.8,
    embedding_exponent: float = 0.23,
    embedding_lower_bound: int = 10,
    exp_embedding_scale_factor: float = 0.25,
) -> int:
    model_size_output_dim = dict(
        S=max(embedding_lower_bound, int(2 * np.ceil(dim_input ** 0.15))),
        M=max(embedding_lower_bound, int(3 * np.ceil(dim_input ** exp_embedding_scale_factor))),
        L=max(embedding_lower_bound, int(4 * np.ceil(dim_input ** 0.33))),
        C=max(embedding_lower_bound, int(embedding_scale_factor * np.ceil(dim_input ** embedding_exponent))),
    )
    return min(dim_input, model_size_output_dim[model_size])


def _flat_context_heuristic(dim_input: int, model_size: str = "M", layer_size=(64,)) -> list:
    model_size_layers = dict(S=[8], M=[64], L=[128], C=list(layer_size))
    layers = model_size_layers[model_size]
    coefficient = round(np.log(max(dim_input, np.e)))
    return [unit * coefficient for unit in layers]


# ----------------------------------------------------------------------------
# Pallas kernel: fused Linear chain  (x @ W0 + b0) @ W1 + b1 ...
# Intermediates never leave on-chip memory; f32 accumulation throughout.
# ----------------------------------------------------------------------------
def _make_fused_compressor_kernel(n_layers: int):
    def kernel(*refs):
        x_ref = refs[0]                       # (TILE_B, F0)   bf16
        o_ref = refs[1 + 2 * n_layers]        # (TILE_B, F_L)  f32
        h = x_ref[...]
        acc = None
        for l in range(n_layers):
            w_ref = refs[1 + 2 * l]           # (F_in, F_out) bf16, resident
            b_ref = refs[2 + 2 * l]           # (1, F_out)    f32,  resident
            acc = jnp.dot(h, w_ref[...], preferred_element_type=jnp.float32) + b_ref[...]
            if l + 1 < n_layers:
                # NOTE: bf16 inter-layer operands (PyTorch keeps f32); error is
                # small and covered by the loose reference check below.
                h = acc.astype(x_ref.dtype)
        o_ref[...] = acc.astype(o_ref.dtype)
    return kernel


def _pick_batch_tile(B: int, f0: int, dims, dtype_bytes_in: int, tile_b: int) -> int:
    """Pick batch tile: multiple of 16 (bf16 sublanes), >=2 tiles for moderate B
    (v7x megacore), clamped to a conservative VMEM budget (v5e-safe)."""
    tb = max(16, (tile_b // 16) * 16)
    if B >= 32:
        # ensure at least 2 grid tiles so ("parallel",) shards across both TCs on v7x
        tb = min(tb, _round_up(pl.cdiv(B, 2), 16))
    tb = min(tb, _round_up(B, 8))  # never exceed the (rounded) batch

    def vmem_bytes(t):
        in_b = 2 * t * f0 * dtype_bytes_in              # double-buffered input
        out_b = 2 * t * dims[-1] * 4                     # double-buffered f32 output
        inter = sum(t * d * (4 + 2) for d in dims)       # f32 acc + bf16 h per layer
        weights = sum(din * dout * 2 + dout * 4
                      for din, dout in zip([f0] + list(dims[:-1]), dims))
        return in_b + out_b + inter + weights

    while tb > 16 and vmem_bytes(tb) > 12 * 1024 * 1024:  # v5e scoped default is 16 MiB
        tb = max(16, ((tb // 2) // 16) * 16)
    return tb


def fused_compressor_pallas(xs: jax.Array, layers, dims, *, tile_b: int = 2048,
                            out_dtype=jnp.float32) -> jax.Array:
    """xs: (B, F0) bf16 activations; layers: [(W bf16 (din,dout), b f32 (1,dout)), ...].

    Returns (B, dims[-1]) in `out_dtype` (f32 by default, matching the module).
    """
    B, f0 = xs.shape
    n_layers = len(layers)
    d_last = dims[-1]

    tb = _pick_batch_tile(B, f0, dims, xs.dtype.itemsize, tile_b)
    grid = (pl.cdiv(B, tb),)

    in_specs = [pl.BlockSpec((tb, f0), lambda i: (i, 0))]
    args = [xs]
    for (w, b) in layers:
        in_specs.append(pl.BlockSpec(w.shape, lambda i: (0, 0)))   # resident weight
        in_specs.append(pl.BlockSpec(b.shape, lambda i: (0, 0)))   # resident bias
        args.extend([w, b])

    flops = 0
    bytes_accessed = xs.size * xs.dtype.itemsize
    for (w, b) in layers:
        flops += 2 * B * w.shape[0] * w.shape[1]
        bytes_accessed += w.size * w.dtype.itemsize + b.size * b.dtype.itemsize
    bytes_accessed += B * d_last * jnp.dtype(out_dtype).itemsize

    out = pl.pallas_call(
        _make_fused_compressor_kernel(n_layers),
        out_shape=jax.ShapeDtypeStruct((B, d_last), out_dtype),
        grid=grid,
        in_specs=in_specs,
        out_specs=pl.BlockSpec((tb, d_last), lambda i: (i, 0)),
        compiler_params=pltpu.CompilerParams(
            dimension_semantics=("parallel",),
        ),
        cost_estimate=pl.CostEstimate(
            flops=int(flops), transcendentals=0, bytes_accessed=int(bytes_accessed)
        ),
    )(*args)
    return out


def _xla_compressor(xs: jax.Array, layers, dims) -> jax.Array:
    """Small-batch fallback: fused XLA dot chain with identical numerics."""
    h = xs
    acc = None
    for l, (w, b) in enumerate(layers):
        acc = jnp.dot(h, w, preferred_element_type=jnp.float32) + b
        if l + 1 < len(layers):
            h = acc.astype(xs.dtype)
    return acc


# ----------------------------------------------------------------------------
# FlatContextCompressor forward (eval mode)
# ----------------------------------------------------------------------------
def flat_context_compressor_forward(x: dict, params: dict, *, tile_b: int = 2048,
                                    min_pallas_batch: int = 1024) -> list:
    """
    x:      dict sub_col -> int32 indices of shape (B, 1)
    params: built by build_params()
    returns [flat_context] with flat_context of shape (B, dims[-1]) f32
    """
    compute_dtype = params["compute_dtype"]

    # Embedders.forward: lookup, squeeze(-2); cast to bf16 inside the concat
    # expression so only one bf16 activation array is materialized.
    # TODO(synk): torch nested-tensor -> padded-tensor path not implemented.
    embeddings = []
    for sub_col, table in params["embeddings"].items():
        idx = x[sub_col]                                    # (B, 1) int
        e = jnp.take(table, idx, axis=0)                    # (B, 1, D_i)
        e = jnp.squeeze(e, axis=-2)                         # (B, D_i)
        embeddings.append(e.astype(compute_dtype))

    flat_context = []
    if embeddings:
        xs = jnp.concatenate(embeddings, axis=-1)           # (B, sum D_i) bf16
        B = xs.shape[0]
        # nn.Dropout in eval mode is the identity.
        # TODO(synk): training-mode stochastic dropout (pltpu.prng_*) not implemented.
        if B < min_pallas_batch:
            out = _xla_compressor(xs, params["layers_kernel"], params["dims"])
        else:
            out = fused_compressor_pallas(xs, params["layers_kernel"], params["dims"],
                                          tile_b=tile_b)
        flat_context = [out]
    return flat_context


# ----------------------------------------------------------------------------
# Deterministic parameter construction
# ----------------------------------------------------------------------------
def build_params(key, cardinalities: dict, model_size: str = "M", custom_dims=None,
                 compute_dtype=jnp.bfloat16):
    emb_dims = {c: _embedding_heuristic(card, model_size, embedding_lower_bound=10)
                for c, card in cardinalities.items()}
    dim_input = sum(emb_dims.values())
    # custom_dims emulates the dict-model_size path of the PyTorch heuristic.
    dims = list(custom_dims) if custom_dims is not None else _flat_context_heuristic(dim_input, model_size)

    n_keys = len(cardinalities) + 2 * len(dims)
    keys = list(jax.random.split(key, n_keys))

    # nn.Embedding init ~ N(0, 1)
    embeddings = {}
    for sub_col, card in cardinalities.items():
        k = keys.pop(0)
        embeddings[sub_col] = jax.random.normal(k, (card, emb_dims[sub_col]), dtype=jnp.float32)

    # nn.Linear init ~ U(-1/sqrt(fan_in), 1/sqrt(fan_in))
    layers = []          # logical f32 (reference semantics)
    layers_kernel = []   # unpadded bf16 weights + f32 (1, d_out) bias (kernel operands)
    for d_in, d_out in zip([dim_input] + dims[:-1], dims):
        kw, kb = keys.pop(0), keys.pop(0)
        bound = 1.0 / math.sqrt(d_in)
        w = jax.random.uniform(kw, (d_in, d_out), minval=-bound, maxval=bound, dtype=jnp.float32)
        b = jax.random.uniform(kb, (d_out,), minval=-bound, maxval=bound, dtype=jnp.float32)
        layers.append((w, b))
        layers_kernel.append((w.astype(compute_dtype), b.reshape(1, d_out)))

    params = {
        "embeddings": embeddings,
        "layers": layers,
        "layers_kernel": layers_kernel,
        "dims": dims,
        "dim_input": dim_input,
        "compute_dtype": compute_dtype,
    }
    return params, emb_dims, dims


# ----------------------------------------------------------------------------
# Reference (plain JAX) with matching operand precision
# ----------------------------------------------------------------------------
def _reference(x, params, cardinalities, bf16_operands: bool):
    embs = [jnp.squeeze(jnp.take(params["embeddings"][c], x[c], axis=0), axis=-2)
            for c in cardinalities]
    h = jnp.concatenate(embs, axis=-1)
    for (w, b) in params["layers"]:
        if bf16_operands:
            h = jnp.dot(h.astype(jnp.bfloat16), w.astype(jnp.bfloat16),
                        preferred_element_type=jnp.float32) + b
        else:
            h = h @ w + b
    return h


def _run_case(seed, cardinalities, B, model_size="M", custom_dims=None, tile_b=2048,
              min_pallas_batch=0):
    key = jax.random.PRNGKey(seed)
    kp, kx = jax.random.split(key)
    params, _, dims = build_params(kp, cardinalities, model_size, custom_dims=custom_dims)

    x = {}
    for sub_col, card in cardinalities.items():
        kx, ksub = jax.random.split(kx)
        x[sub_col] = jax.random.randint(ksub, (B, 1), 0, card, dtype=jnp.int32)

    out = flat_context_compressor_forward(x, params, tile_b=tile_b,
                                          min_pallas_batch=min_pallas_batch)
    out = [jax.block_until_ready(o) for o in out]
    assert len(out) == 1
    assert out[0].shape == (B, dims[-1])

    # Tight check vs a plain-JAX reference using the same bf16 operand precision.
    ref_bf = _reference(x, params, cardinalities, bf16_operands=True)
    np.testing.assert_allclose(np.asarray(out[0], dtype=np.float32), np.asarray(ref_bf),
                               rtol=1e-4, atol=1e-4)
    # Loose sanity check vs full-f32 PyTorch-equivalent math.
    ref_f32 = _reference(x, params, cardinalities, bf16_operands=False)
    np.testing.assert_allclose(np.asarray(out[0], dtype=np.float32), np.asarray(ref_f32),
                               rtol=5e-2, atol=5e-2)


if __name__ == "__main__":
    # Case 1: standard "M" model (single compressor layer), tiny batch; force the
    # Pallas path (min_pallas_batch=0) so the kernel itself is exercised.
    _run_case(seed=0, cardinalities={"cat_a": 7, "cat_b": 20, "cat_c": 5}, B=8,
              model_size="M", min_pallas_batch=0)

    # Case 2: multi-layer chain (dict-model_size path), batch not divisible by the
    # tile (exercises ragged last block, grid>1 / megacore split, layer fusion).
    _run_case(seed=1, cardinalities={"cat_a": 7, "cat_b": 20, "cat_c": 5}, B=200,
              model_size="M", custom_dims=[48, 32], tile_b=64, min_pallas_batch=0)

    # Case 3: small-batch XLA fallback path (default threshold).
    _run_case(seed=2, cardinalities={"cat_a": 7, "cat_b": 20, "cat_c": 5}, B=16,
              model_size="M", min_pallas_batch=1024)

    print("KERNEL_OK")
</pallas_src>

<mosaic_0001>
module attributes {stable_mosaic.version = 11 : i64} {
  func.func @kernel(%arg0: i32, %arg1: memref<8x22xbf16, #tpu.memory_space<vmem>>, %arg2: memref<22x192xbf16, #tpu.memory_space<vmem>>, %arg3: memref<1x192xf32, #tpu.memory_space<vmem>>, %arg4: memref<8x192xf32, #tpu.memory_space<vmem>>) attributes {dimension_semantics = [#tpu.dimension_semantics<parallel>], iteration_bounds = array<i64: 1>, scalar_prefetch = 0 : i64, scratch_operands = 0 : i64, tpu.core_type = #tpu.core_type<tc>, window_params = [{transform_indices = @transform_0, window_bounds = array<i64: 8, 22>}, {pipeline_mode = #tpu.pipeline_mode<synchronous>, transform_indices = @transform_1, window_bounds = array<i64: 22, 192>}, {pipeline_mode = #tpu.pipeline_mode<synchronous>, transform_indices = @transform_2, window_bounds = array<i64: 1, 192>}, {transform_indices = @transform_3, window_bounds = array<i64: 8, 192>}]} {
    %c0 = arith.constant 0 : index
    %c0_0 = arith.constant 0 : index
    %0 = vector.load %arg1[%c0, %c0_0] : memref<8x22xbf16, #tpu.memory_space<vmem>>, vector<8x22xbf16>
    %c0_1 = arith.constant 0 : index
    %c0_2 = arith.constant 0 : index
    %1 = vector.load %arg2[%c0_1, %c0_2] : memref<22x192xbf16, #tpu.memory_space<vmem>>, vector<22x192xbf16>
    %cst = arith.constant dense<0.000000e+00> : vector<8x192xf32>
    %2 = tpu.matmul %0, %1, %cst {dimension_numbers = #tpu.dot_dimension_numbers<[1], [0], [0], [1], [0, 0, 1, 1], [], []>} : vector<8x22xbf16>, vector<22x192xbf16>, vector<8x192xf32> -> vector<8x192xf32>
    %c0_3 = arith.constant 0 : index
    %c0_4 = arith.constant 0 : index
    %3 = vector.load %arg3[%c0_3, %c0_4] : memref<1x192xf32, #tpu.memory_space<vmem>>, vector<1x192xf32>
    %4 = vector.broadcast %3 : vector<1x192xf32> to vector<8x192xf32>
    %5 = arith.addf %2, %4 : vector<8x192xf32>
    %c0_5 = arith.constant 0 : index
    %c0_6 = arith.constant 0 : index
    %6 = vector.load %arg4[%c0_5, %c0_6] : memref<8x192xf32, #tpu.memory_space<vmem>>, vector<8x192xf32>
    tpu.vector_store %arg4[%c0_5, %c0_6], %5 {strides = array<i32>} : memref<8x192xf32, #tpu.memory_space<vmem>>, vector<8x192xf32>,
    return
  }
  func.func @transform_0(%arg0: i32) -> (i32, i32) {
    %c0_i32 = arith.constant 0 : i32
    %c0_i32_0 = arith.constant 0 : i32
    return %arg0, %c0_i32 : i32, i32
  }
  func.func @transform_1(%arg0: i32) -> (i32, i32) {
    %c0_i32 = arith.constant 0 : i32
    %c0_i32_0 = arith.constant 0 : i32
    %c0_i32_1 = arith.constant 0 : i32
    return %c0_i32, %c0_i32_0 : i32, i32
  }
  func.func @transform_2(%arg0: i32) -> (i32, i32) {
    %c0_i32 = arith.constant 0 : i32
    %c0_i32_0 = arith.constant 0 : i32
    %c0_i32_1 = arith.constant 0 : i32
    return %c0_i32, %c0_i32_0 : i32, i32
  }
  func.func @transform_3(%arg0: i32) -> (i32, i32) {
    %c0_i32 = arith.constant 0 : i32
    %c0_i32_0 = arith.constant 0 : i32
    return %arg0, %c0_i32 : i32, i32
  }
}

</mosaic_0001>

<llo_original>
// kernel: tpu_custom_call.1
$region0: #{tpu_custom_call.1}
  #allocation0 [shape = 'u32[]', space=smem, size = 0x4, offset = 0x4, fixed_abs, tag = 'smem constant byte address 0x4 - core index']
  #allocation1 [shape = 'u32[144,128]{1,0:T(1,128)}', space=vmem, size = 0x12000, scoped, tag = 'internal scratch']
  %s0 = inlined_call_operand.hbm [shape: bf16[8,22], index: 0, kind: input, shape index: {}]
  %s1 = inlined_call_operand.hbm [shape: bf16[22,192], index: 1, kind: input, shape index: {}]
  %s2 = inlined_call_operand.vmem [shape: f32[1,192], index: 2, kind: input, shape index: {}]
  %s3 = inlined_call_operand.hbm [shape: f32[8,192], index: 3, kind: output, shape index: {}]
  %s4 = sld [smem:[#allocation0]]
  $region30: #{tpu_custom_call.1} parent=0
    _
  %s6 = ssub.s32 1, %s4
  %s7 = scalar_select 0, %s6, %s4
  $region1: #{tpu_custom_call.1} parent=0
    #allocation2 [shape = 'u8[2048]{0}', space=vmem, size = 0x800, scoped, tag = 'input window, operand 0, single buffered']
    #allocation3 [shape = 's32[1]{0}', space=sflag, size = 0x4, scoped, tag = 'scoped memory for tpu_custom_call.1']
    #allocation4 [shape = 's32[1]{0}', space=sflag, size = 0x4, scoped, tag = 'scoped memory for tpu_custom_call.1']
    #allocation5 [shape = 'u8[12288]{0}', space=vmem, size = 0x3000, scoped, tag = 'input window, operand 1, single buffered']
    #allocation6 [shape = 's32[1]{0}', space=sflag, size = 0x4, scoped, tag = 'scoped memory for tpu_custom_call.1']
    #allocation7 [shape = 'u8[8192]{0}', space=vmem, size = 0x2000, scoped, tag = 'output window, operand 0, single buffered']
    %8 = vsyncpa [#allocation3], 0
    %9 = vsyncpa [#allocation6], 0
    %10 = vsyncpa [#allocation4], 0
    // Predicated region
    $region2: #{tpu_custom_call.1} parent=1 // pred_check
      _
    $region3: #{tpu_custom_call.1} parent=1 // pred_check_branch
      %12 = sbr.rel (0) target = $region5
    $region4: #{tpu_custom_call.1} parent=1 // pred_region
      %s14 = ssub.s32 64, 64
      %15 = vsyncadd [#allocation3], %s14
      %s17 = sshll.u32 [#allocation2], 4
      %s18 = int_to_ptr.vmem [resolvable:$true] %s17
      %20 = dma.hbm_to_vmem [thread:$0]  %s0, 64, %s18, [#allocation3]
    $region5: #{tpu_custom_call.1} parent=1 // pred_fallthru
      _
    // Predicated region
    $region6: #{tpu_custom_call.1} parent=1 // pred_check
      _
    $region7: #{tpu_custom_call.1} parent=1 // pred_check_branch
      %22 = sbr.rel (0) target = $region9
    $region8: #{tpu_custom_call.1} parent=1 // pred_region
      %s24 = ssub.s32 384, 384
      %25 = vsyncadd [#allocation6], %s24
      %s26 = sshll.u32 [#allocation5], 4
      %s27 = int_to_ptr.vmem [resolvable:$true] %s26
      %32 = dma.hbm_to_vmem [thread:$0]  %s1, 384, %s27, [#allocation6], 128, 128, 8
    $region9: #{tpu_custom_call.1} parent=1 // pred_fallthru
      _
    // Predicated region
    $region10: #{tpu_custom_call.1} parent=1 // pred_check
      _
    $region11: #{tpu_custom_call.1} parent=1 // pred_check_branch
      %34 = sbr.rel (0) target = $region13
    $region12: #{tpu_custom_call.1} parent=1 // pred_region
      _
    $region13: #{tpu_custom_call.1} parent=1 // pred_fallthru
      _
    // Predicated region
    $region14: #{tpu_custom_call.1} parent=1 // pred_check
      _
    $region15: #{tpu_custom_call.1} parent=1 // pred_check_branch
      %36 = sbr.rel (0) target = $region17
    $region16: #{tpu_custom_call.1} parent=1 // pred_region
      %37 = dma.done [#allocation3], 64
    $region17: #{tpu_custom_call.1} parent=1 // pred_fallthru
      _
    // Predicated region
    $region18: #{tpu_custom_call.1} parent=1 // pred_check
      _
    $region19: #{tpu_custom_call.1} parent=1 // pred_check_branch
      %39 = sbr.rel (0) target = $region21
    $region20: #{tpu_custom_call.1} parent=1 // pred_region
      %40 = dma.done [#allocation6], 384
    $region21: #{tpu_custom_call.1} parent=1 // pred_fallthru
      _
    %v42 = vld [vmem:[#allocation2] sm:$0xf]
    %v43 = vld [vmem:[#allocation5] sm:$0xff]
    %v44 = vld [vmem:[#allocation5 + $0x8] sm:$0xff]
    %v45 = vld [vmem:[#allocation5 + $0x10] sm:$0x77]
    %v46 = vld [vmem:[%s2] sm:$0x3]
    %v48 = vlaneseq
    %v49 = vshrl.u32 %v48, 7
    %v50 = vsub.s32 0, %v49
    %v51 = vrot.slane %v46, %v50
    %v52 = vlaneseq
    %v53 = vshrl.u32 %v52, 7
    %v54 = vsub.s32 1, %v53
    %v55 = vrot.slane %v46, %v54
    %v61 = vunpack.c.l.b16 %v43
    %v62 = vunpack.c.h.b16 %v43
    %v63 = vunpack.c.l.b16 %v44
    %v64 = vunpack.c.h.b16 %v44
    %v65 = vunpack.c.l.b16 %v45
    %v66 = vunpack.c.h.b16 %v45
    %v67 = vpack.c.b16 %v63, %v61
    %v68 = vpack.c.b16 %v64, %v62
    %v69 = vpack.c.b16 %v65, %v65
    %v70 = vpack.c.b16 %v66, %v66
    %vm73 = vcmask 179200
    %v75 = vsel %vm73, %v42, 0
    %vm77 = vcmask 1042432
    %v79 = vsel %vm77, %v69, 0
    %v82 = vsel %vm77, %v70, 0
    %84 = vmatprep.subr.bf16.mxu0 %v68
    %85 = vmatpush1.bf16.msra.mxu0 %v67
    %86 = vmatprep.subr.bf16.mxu0 %v82
    %87 = vmatpush1.bf16.msra.mxu0 %v79
    %88 = vmatprep.subr.bf16.mxu0 0
    %89 = vmatpush1.bf16.msra.mxu0 0
    %90 = vmatprep.subr.bf16.mxu0 0
    %91 = vmatpush1.bf16.msra.mxu0 0
    %92 = vmatprep.subr.bf16.mxu0 0
    %93 = vmatpush1.bf16.msra.mxu0 0
    %94 = vmatprep.subr.bf16.mxu0 0
    %95 = vmatpush1.bf16.msra.mxu0 0
    %96 = vmatprep.subr.bf16.mxu0 0
    %97 = vmatpush1.bf16.msra.mxu0 0
    %98 = vmatprep.subr.bf16.mxu0 0
    %99 = vmatpush1.bf16.msra.mxu0 0
    %100 = vmatprep.subr.bf16.mxu0 0
    %101 = vmatpush1.bf16.msra.mxu0 0
    %102 = vmatprep.subr.bf16.mxu0 0
    %103 = vmatpush1.bf16.msra.mxu0 0
    %104 = vmatprep.subr.bf16.mxu0 0
    %105 = vmatpush1.bf16.msra.mxu0 0
    %106 = vmatprep.subr.bf16.mxu0 0
    %107 = vmatpush1.bf16.msra.mxu0 0
    %108 = vmatprep.subr.bf16.mxu0 0
    %109 = vmatpush1.bf16.msra.mxu0 0
    %110 = vmatprep.subr.bf16.mxu0 0
    %111 = vmatpush1.bf16.msra.mxu0 0
    %112 = vmatprep.subr.bf16.mxu0 0
    %113 = vmatpush1.bf16.msra.mxu0 0
    %114 = vmatprep.subr.bf16.mxu0 0
    %115 = vmatpush1.bf16.msra.mxu0 0
    %116 = vmatprep.mubr.bf16.mxu0 0
    %117 = vmatmul.mubr.bf16.gmra.mrb[0].mxu0 %v75
    %v118 = vpop.f32.mrb[0].mxu0
    %v119 = vadd.f32 %v51, %v118
    %v120 = vpop.f32.mrb[0].mxu0
    %v121 = vadd.f32 %v55, %v120
    %v122 = vpop.f32.mrb[0].mxu0
    %v123 = vpop.f32.mrb[0].mxu0
    %124 = vdwg.mxu0
    %125 = vst [vmem:[#allocation7] sm:$0xff] %v119
    %vm126 = vcmask 523264
    %127 = vst.msk [vmem:[#allocation7 + $0x8] sm:$0xff] %vm126, %v121
    // Predicated region
    $region22: #{tpu_custom_call.1} parent=1 // pred_check
      _
    $region23: #{tpu_custom_call.1} parent=1 // pred_check_branch
      %129 = sbr.rel (0) target = $region25
    $region24: #{tpu_custom_call.1} parent=1 // pred_region
      %s131 = ssub.s32 256, 256
      %132 = vsyncadd [#allocation4], %s131
      %s134 = sshll.u32 [#allocation7], 4
      %s135 = int_to_ptr.vmem [resolvable:$true] %s134
      %137 = dma.vmem_to_hbm [thread:$0]  %s135, 256, %s3, [#allocation4]
    $region25: #{tpu_custom_call.1} parent=1 // pred_fallthru
      _
    // Predicated region
    $region26: #{tpu_custom_call.1} parent=1 // pred_check
      _
    $region27: #{tpu_custom_call.1} parent=1 // pred_check_branch
      %139 = sbr.rel (0) target = $region29
    $region28: #{tpu_custom_call.1} parent=1 // pred_region
      %140 = dma.done [#allocation4], 256
    $region29: #{tpu_custom_call.1} parent=1 // pred_fallthru
      _
    %141 = vsyncpa [#allocation3], 1
    %142 = vsyncpa [#allocation6], 1
    %143 = vsyncpa [#allocation4], 1

</llo_original>
